<compile_context>
chip_gen: v5e
topology: v5e:2x2
jax: 0.10.0
libtpu: 0.0.40
codegen_flags: <defaults>
</compile_context>

<pallas_src>
import functools
import math
from typing import NamedTuple

import jax
import jax.numpy as jnp
from jax.experimental import pallas as pl
from jax.experimental.pallas import tpu as pltpu


# ---------------------------------------------------------------------------
# Fused kernel: x -> [Linear (+LeakyReLU)]* -> Linear, all heads at once.
# ---------------------------------------------------------------------------
def _hypernet_fused_kernel(x_ref, w_ref, b_ref, o_ref, *, layer_dims,
                           negative_slope):
    # x_ref: (B, k0_pad) f32
    # w_ref: (L, K_max, N_max) f32, zero-padded, layer li uses [:k, :n]
    # b_ref: (L, 1, N_max)    f32, zero-padded
    # o_ref: (B, n_last_pad)  f32 (lane-dense, multiple of 128)
    h = x_ref[...]
    n_layers = len(layer_dims)
    for li, (k, n) in enumerate(layer_dims):
        w = w_ref[li][:k, :n]            # static slice of the loaded slab
        b = b_ref[li][:, :n]             # (1, n)
        h = jnp.dot(h, w, preferred_element_type=jnp.float32) + b
        if li != n_layers - 1:
            h = jnp.maximum(h, negative_slope * h)   # LeakyReLU(0.2)
    o_ref[...] = h


# ---------------------------------------------------------------------------
# Packed-parameter container + forward wrapper.
# ---------------------------------------------------------------------------
class PackedHyperNet(NamedTuple):
    w_slab: jax.Array          # (L, K_max, N_max) f32
    b_slab: jax.Array          # (L, 1,   N_max)   f32
    layer_dims: tuple          # ((k_use, n_pad), ...) static ints per layer
    in_feat: int
    k0_pad: int
    n_out: int                 # true sum(out_group)


def hypernetwork_forward(packed: PackedHyperNet, f):
    """Pallas-backed equivalent of HyperNetwork.forward (single fused call)."""
    f = f.astype(jnp.float32)                       # matches f.float()
    B = f.shape[0]
    if packed.in_feat != packed.k0_pad:             # pad K0 to sublane multiple
        f = jnp.pad(f, ((0, 0), (0, packed.k0_pad - packed.in_feat)))

    n_last_pad = packed.layer_dims[-1][1]
    kernel = functools.partial(
        _hypernet_fused_kernel,
        layer_dims=packed.layer_dims,
        negative_slope=0.2,
    )
    vmem_spec = pl.BlockSpec(memory_space=pltpu.MemorySpace.VMEM)
    out_padded = pl.pallas_call(
        kernel,
        out_shape=jax.ShapeDtypeStruct((B, n_last_pad), jnp.float32),
        in_specs=[vmem_spec, vmem_spec, vmem_spec],
        out_specs=vmem_spec,
    )(f, packed.w_slab, packed.b_slab)
    # Padded columns are exact zeros; single slice at the consumer.
    return out_padded[:, :packed.n_out]


# ---------------------------------------------------------------------------
# Parameter init (mirrors nn.Linear) and packing into fused, padded slabs.
# ---------------------------------------------------------------------------
def init_hypernetwork(key, in_feat, out_group, n_layer=1):
    """Per-head params mirroring nn.Linear's uniform(-1/sqrt(fan_in), .) init."""
    params = []
    for out_feat in out_group:
        layer_dims = [(in_feat, in_feat)] * (n_layer - 1) + [(in_feat, out_feat)]
        mod = []
        for fi, fo in layer_dims:
            key, kw, kb = jax.random.split(key, 3)
            bound = 1.0 / math.sqrt(fi)
            w = jax.random.uniform(kw, (fi, fo), jnp.float32, -bound, bound)
            b = jax.random.uniform(kb, (fo,), jnp.float32, -bound, bound)
            mod.append((w, b))
        params.append(mod)
    return params


def _block_diag(mats):
    rows = sum(m.shape[0] for m in mats)
    cols = sum(m.shape[1] for m in mats)
    out = jnp.zeros((rows, cols), mats[0].dtype)
    r = c = 0
    for m in mats:
        out = out.at[r:r + m.shape[0], c:c + m.shape[1]].set(m)
        r += m.shape[0]
        c += m.shape[1]
    return out


def _round_up(x, m):
    return ((x + m - 1) // m) * m


def pack_hypernetwork(params, *, lane=128, sublane=8):
    """Pack per-head (W, b) lists into kernel-ready padded slabs (done once).

    Layer 0 weights are stacked along the output axis; subsequent layers are
    block-diagonal so heads stay independent. K dims padded to multiples of 8,
    N dims to multiples of 128 with exact zeros (semantics unchanged). All
    layers are stacked into one (L, K_max, N_max) weight slab and one
    (L, 1, N_max) bias slab so the kernel takes only 3 input refs.
    """
    n_layer = len(params[0])

    # 1) Fuse heads per layer.
    fused = []
    for li in range(n_layer):
        ws = [mod[li][0] for mod in params]
        bs = [mod[li][1] for mod in params]
        w = jnp.concatenate(ws, axis=1) if li == 0 else _block_diag(ws)
        b = jnp.concatenate(bs, axis=0)
        fused.append((w.astype(jnp.float32), b.astype(jnp.float32)))

    in_feat = fused[0][0].shape[0]
    n_out = fused[-1][0].shape[1]
    k0_pad = _round_up(in_feat, sublane)

    # 2) Pad each fused layer to hardware tiles.
    layer_dims = []
    padded_ws, padded_bs = [], []
    prev_n_pad = k0_pad
    for li, (w, b) in enumerate(fused):
        k, n = w.shape
        k_use = prev_n_pad                       # == padded width of the input to this layer
        n_pad = _round_up(n, lane)
        wp = jnp.zeros((k_use, n_pad), jnp.float32).at[:k, :n].set(w)
        bp = jnp.zeros((1, n_pad), jnp.float32).at[0, :n].set(b)
        padded_ws.append(wp)
        padded_bs.append(bp)
        layer_dims.append((k_use, n_pad))
        prev_n_pad = n_pad

    # 3) Stack into single slabs (one DMA each).
    k_max = max(k for k, _ in layer_dims)
    n_max = max(n for _, n in layer_dims)
    w_slab = jnp.zeros((n_layer, k_max, n_max), jnp.float32)
    b_slab = jnp.zeros((n_layer, 1, n_max), jnp.float32)
    for li, (wp, bp) in enumerate(zip(padded_ws, padded_bs)):
        k_use, n_pad = layer_dims[li]
        w_slab = w_slab.at[li, :k_use, :n_pad].set(wp)
        b_slab = b_slab.at[li, :, :n_pad].set(bp)

    return PackedHyperNet(
        w_slab=w_slab,
        b_slab=b_slab,
        layer_dims=tuple(layer_dims),
        in_feat=in_feat,
        k0_pad=k0_pad,
        n_out=n_out,
    )


def hypernetwork_forward_ref(params, f):
    """Pure-JAX per-head reference for correctness checking."""
    f = f.astype(jnp.float32)
    delta = []
    for mod in params:
        h = f
        for li, (w, b) in enumerate(mod):
            h = h @ w + b
            if li != len(mod) - 1:
                h = jnp.where(h >= 0, h, 0.2 * h)
        delta.append(h)
    return jnp.concatenate(delta, axis=1)


# ---------------------------------------------------------------------------
if __name__ == "__main__":
    key = jax.random.PRNGKey(0)
    k_param, k_input, k_param1 = jax.random.split(key, 3)

    batch = 2
    in_feat = 32
    out_group = (64, 96, 16)   # three hypernetwork heads of different widths
    n_layer = 2                # Linear+LeakyReLU per head, then output Linear

    params = init_hypernetwork(k_param, in_feat, out_group, n_layer=n_layer)
    packed = pack_hypernetwork(params)
    f = jax.random.normal(k_input, (batch, in_feat), dtype=jnp.float32)

    out = jax.block_until_ready(hypernetwork_forward(packed, f))
    expected_shape = (batch, sum(out_group))
    assert out.shape == expected_shape, (out.shape, expected_shape)

    ref = hypernetwork_forward_ref(params, f)
    assert jnp.allclose(out, ref, atol=1e-5, rtol=1e-5), "mismatch vs reference"

    # Also exercise the n_layer=1 path (single Linear per head, no activation).
    params1 = init_hypernetwork(k_param1, in_feat, out_group, n_layer=1)
    packed1 = pack_hypernetwork(params1)
    out1 = jax.block_until_ready(hypernetwork_forward(packed1, f))
    ref1 = hypernetwork_forward_ref(params1, f)
    assert out1.shape == expected_shape, (out1.shape, expected_shape)
    assert jnp.allclose(out1, ref1, atol=1e-5, rtol=1e-5), "n_layer=1 mismatch"

    print("KERNEL_OK")
</pallas_src>

<mosaic_0001>
module attributes {stable_mosaic.version = 11 : i64} {
  func.func @_hypernet_fused_kernel(%arg0: memref<2x32xf32, #tpu.memory_space<vmem>>, %arg1: memref<2x128x256xf32, #tpu.memory_space<vmem>>, %arg2: memref<2x1x256xf32, #tpu.memory_space<vmem>>, %arg3: memref<2x256xf32, #tpu.memory_space<vmem>>) attributes {dimension_semantics = [], scalar_prefetch = 0 : i64, scratch_operands = 0 : i64, tpu.core_type = #tpu.core_type<tc>} {
    %c0 = arith.constant 0 : index
    %c0_0 = arith.constant 0 : index
    %0 = vector.load %arg0[%c0, %c0_0] : memref<2x32xf32, #tpu.memory_space<vmem>>, vector<2x32xf32>
    %c0_1 = arith.constant 0 : index
    %c0_2 = arith.constant 0 : index
    %c0_3 = arith.constant 0 : index
    %1 = vector.load %arg1[%c0_1, %c0_2, %c0_3] : memref<2x128x256xf32, #tpu.memory_space<vmem>>, vector<1x128x256xf32>
    %2 = vector.shape_cast %1 : vector<1x128x256xf32> to vector<128x256xf32>
    %3 = vector.extract_strided_slice %2 {offsets = [0, 0], sizes = [32, 128], strides = [1, 1]} : vector<128x256xf32> to vector<32x128xf32>
    %c0_4 = arith.constant 0 : index
    %c0_5 = arith.constant 0 : index
    %c0_6 = arith.constant 0 : index
    %4 = vector.load %arg2[%c0_4, %c0_5, %c0_6] : memref<2x1x256xf32, #tpu.memory_space<vmem>>, vector<1x1x256xf32>
    %5 = vector.shape_cast %4 : vector<1x1x256xf32> to vector<1x256xf32>
    %6 = vector.extract_strided_slice %5 {offsets = [0, 0], sizes = [1, 128], strides = [1, 1]} : vector<1x256xf32> to vector<1x128xf32>
    %cst = arith.constant dense<0.000000e+00> : vector<2x128xf32>
    %7 = tpu.matmul %0, %3, %cst {dimension_numbers = #tpu.dot_dimension_numbers<[1], [0], [0], [1], [0, 0, 1, 1], [], []>} : vector<2x32xf32>, vector<32x128xf32>, vector<2x128xf32> -> vector<2x128xf32>
    %8 = vector.broadcast %6 : vector<1x128xf32> to vector<2x128xf32>
    %9 = arith.addf %7, %8 : vector<2x128xf32>
    %cst_7 = arith.constant 2.000000e-01 : f32
    %10 = vector.broadcast %cst_7 : f32 to vector<2x128xf32>
    %11 = arith.mulf %10, %9 : vector<2x128xf32>
    %12 = arith.maximumf %9, %11 : vector<2x128xf32>
    %c1 = arith.constant 1 : index
    %c0_8 = arith.constant 0 : index
    %c0_9 = arith.constant 0 : index
    %13 = vector.load %arg1[%c1, %c0_8, %c0_9] : memref<2x128x256xf32, #tpu.memory_space<vmem>>, vector<1x128x256xf32>
    %14 = vector.shape_cast %13 : vector<1x128x256xf32> to vector<128x256xf32>
    %c1_10 = arith.constant 1 : index
    %c0_11 = arith.constant 0 : index
    %c0_12 = arith.constant 0 : index
    %15 = vector.load %arg2[%c1_10, %c0_11, %c0_12] : memref<2x1x256xf32, #tpu.memory_space<vmem>>, vector<1x1x256xf32>
    %16 = vector.shape_cast %15 : vector<1x1x256xf32> to vector<1x256xf32>
    %cst_13 = arith.constant dense<0.000000e+00> : vector<2x256xf32>
    %17 = tpu.matmul %12, %14, %cst_13 {dimension_numbers = #tpu.dot_dimension_numbers<[1], [0], [0], [1], [0, 0, 1, 1], [], []>} : vector<2x128xf32>, vector<128x256xf32>, vector<2x256xf32> -> vector<2x256xf32>
    %18 = vector.broadcast %16 : vector<1x256xf32> to vector<2x256xf32>
    %19 = arith.addf %17, %18 : vector<2x256xf32>
    %c0_14 = arith.constant 0 : index
    %c0_15 = arith.constant 0 : index
    %20 = vector.load %arg3[%c0_14, %c0_15] : memref<2x256xf32, #tpu.memory_space<vmem>>, vector<2x256xf32>
    tpu.vector_store %arg3[%c0_14, %c0_15], %19 {strides = array<i32>} : memref<2x256xf32, #tpu.memory_space<vmem>>, vector<2x256xf32>,
    return
  }
}

</mosaic_0001>

<llo_original>
// kernel: tpu_custom_call.1
$region0: #{tpu_custom_call.1}
  #allocation0 [shape = 'u32[]', space=smem, size = 0x4, offset = 0x4, fixed_abs, tag = 'smem constant byte address 0x4 - core index']
  #allocation1 [shape = 'u32[72,128]{1,0:T(1,128)}', space=vmem, size = 0x9000, scoped, tag = 'internal scratch']
  %s0 = inlined_call_operand.hbm [shape: f32[2,32], index: 0, kind: input, shape index: {}]
  %s1 = inlined_call_operand.hbm [shape: f32[2,128,256], index: 1, kind: input, shape index: {}]
  %s2 = inlined_call_operand.hbm [shape: f32[2,1,256], index: 2, kind: input, shape index: {}]
  %s3 = inlined_call_operand.hbm [shape: f32[2,256], index: 3, kind: output, shape index: {}]
  %s4 = sld [smem:[#allocation0]]
  $region34: #{tpu_custom_call.1} parent=0
    _
  %s6 = ssub.s32 1, %s4
  %s7 = scalar_select 0, %s6, %s4
  $region1: #{tpu_custom_call.1} parent=0
    #allocation2 [shape = 'u8[1024]{0}', space=vmem, size = 0x400, scoped, tag = 'input window, operand 0, single buffered']
    #allocation3 [shape = 's32[1]{0}', space=sflag, size = 0x4, scoped, tag = 'scoped memory for tpu_custom_call.1']
    #allocation4 [shape = 's32[1]{0}', space=sflag, size = 0x4, scoped, tag = 'scoped memory for tpu_custom_call.1']
    #allocation5 [shape = 'u8[262144]{0}', space=vmem, size = 0x40000, scoped, tag = 'input window, operand 1, single buffered']
    #allocation6 [shape = 's32[1]{0}', space=sflag, size = 0x4, scoped, tag = 'scoped memory for tpu_custom_call.1']
    #allocation7 [shape = 'u8[2048]{0}', space=vmem, size = 0x800, scoped, tag = 'input window, operand 2, single buffered']
    #allocation8 [shape = 'u8[2048]{0}', space=vmem, size = 0x800, scoped, tag = 'output window, operand 0, single buffered']
    %8 = vsyncpa [#allocation3], 0
    %9 = vsyncpa [#allocation6], 0
    %10 = vsyncpa [#allocation4], 0
    // Predicated region
    $region2: #{tpu_custom_call.1} parent=1 // pred_check
      _
    $region3: #{tpu_custom_call.1} parent=1 // pred_check_branch
      %12 = sbr.rel (0) target = $region5
    $region4: #{tpu_custom_call.1} parent=1 // pred_region
      %14 = vsyncadd [#allocation3], 0
      %s16 = sshll.u32 %s0, 4
      %s17 = int_to_ptr.hbm [resolvable:$true] %s16
      %s18 = sshll.u32 [#allocation2], 4
      %s19 = int_to_ptr.vmem [resolvable:$true] %s18
      %21 = dma.hbm_to_vmem [thread:$0]  %s17, 32, %s19, [#allocation3]
    $region5: #{tpu_custom_call.1} parent=1 // pred_fallthru
      _
    // Predicated region
    $region6: #{tpu_custom_call.1} parent=1 // pred_check
      _
    $region7: #{tpu_custom_call.1} parent=1 // pred_check_branch
      %23 = sbr.rel (0) target = $region9
    $region8: #{tpu_custom_call.1} parent=1 // pred_region
      %25 = vsyncadd [#allocation6], 0
      %s26 = sshll.u32 %s1, 4
      %s27 = int_to_ptr.hbm [resolvable:$true] %s26
      %s28 = sshll.u32 [#allocation5], 4
      %s29 = int_to_ptr.vmem [resolvable:$true] %s28
      %34 = dma.hbm_to_vmem [thread:$0]  %s27, 8192, %s29, [#allocation6], 256, 256, 16
    $region9: #{tpu_custom_call.1} parent=1 // pred_fallthru
      _
    // Predicated region
    $region10: #{tpu_custom_call.1} parent=1 // pred_check
      _
    $region11: #{tpu_custom_call.1} parent=1 // pred_check_branch
      %36 = sbr.rel (0) target = $region13
    $region12: #{tpu_custom_call.1} parent=1 // pred_region
      %38 = vsyncadd [#allocation6], 0
      %s39 = sshll.u32 %s2, 4
      %s40 = int_to_ptr.hbm [resolvable:$true] %s39
      %s41 = sshll.u32 [#allocation7], 4
      %s42 = int_to_ptr.vmem [resolvable:$true] %s41
      %47 = dma.hbm_to_vmem [thread:$0]  %s40, 64, %s42, [#allocation6], 32, 32, 2
    $region13: #{tpu_custom_call.1} parent=1 // pred_fallthru
      _
    // Predicated region
    $region14: #{tpu_custom_call.1} parent=1 // pred_check
      _
    $region15: #{tpu_custom_call.1} parent=1 // pred_check_branch
      %49 = sbr.rel (0) target = $region17
    $region16: #{tpu_custom_call.1} parent=1 // pred_region
      %51 = dma.done [#allocation3], 32
    $region17: #{tpu_custom_call.1} parent=1 // pred_fallthru
      _
    // Predicated region
    $region18: #{tpu_custom_call.1} parent=1 // pred_check
      _
    $region19: #{tpu_custom_call.1} parent=1 // pred_check_branch
      %53 = sbr.rel (0) target = $region21
    $region20: #{tpu_custom_call.1} parent=1 // pred_region
      %55 = dma.done [#allocation6], 8192
    $region21: #{tpu_custom_call.1} parent=1 // pred_fallthru
      _
    // Predicated region
    $region22: #{tpu_custom_call.1} parent=1 // pred_check
      _
    $region23: #{tpu_custom_call.1} parent=1 // pred_check_branch
      %57 = sbr.rel (0) target = $region25
    $region24: #{tpu_custom_call.1} parent=1 // pred_region
      %59 = dma.done [#allocation6], 64
    $region25: #{tpu_custom_call.1} parent=1 // pred_fallthru
      _
    %v60 = vld [vmem:[#allocation2] sm:$0x3]
    %v61 = vld [vmem:[#allocation5] sm:$0xff]
    %v62 = vld [vmem:[#allocation5 + $0x10] sm:$0xff]
    %v63 = vld [vmem:[#allocation5 + $0x20] sm:$0xff]
    %v64 = vld [vmem:[#allocation5 + $0x30] sm:$0xff]
    %v65 = vld [vmem:[#allocation7] sm:$0x3]
    %v67 = vperm.slane %v65, 0
    %vm69 = vcmask 261120
    %v71 = vsel %vm69, %v60, 0
    %73 = vmatpush.msra.mxu0 0.0
    %74 = vmatpush.msra.mxu0 0.0
    %75 = vmatpush.msra.mxu0 0.0
    %76 = vmatpush.msra.mxu0 0.0
    %77 = vmatpush.msra.mxu0 0.0
    %78 = vmatpush.msra.mxu0 0.0
    %79 = vmatpush.msra.mxu0 0.0
    %80 = vmatpush.msra.mxu0 0.0
    %81 = vmatpush.msra.mxu0 0.0
    %82 = vmatpush.msra.mxu0 0.0
    %83 = vmatpush.msra.mxu0 0.0
    %84 = vmatpush.msra.mxu0 0.0
    %85 = vmatpush.msra.mxu0 %v64
    %86 = vmatpush.msra.mxu0 %v63
    %87 = vmatpush.msra.mxu0 %v62
    %88 = vmatpush.msra.mxu0 %v61
    %89 = vmatmul.f32.gmra.mxu0 %v71
    %v90 = vpop.f32.mrf.mxu0
    %v91 = vadd.f32 %v67, %v90
    %92 = vdwg.mxu0
    %v93 = vmul.f32 %v91, 0.2
    %v94 = vmax.f32 %v91, %v93
    %s95 = scalar_lea.vmem [#allocation5], 256
    %v96 = vld [vmem:[%s95] sm:$0xff]
    %v97 = vld [vmem:[%s95 + $0x8] sm:$0xff]
    %v98 = vld [vmem:[%s95 + $0x10] sm:$0xff]
    %v99 = vld [vmem:[%s95 + $0x18] sm:$0xff]
    %v100 = vld [vmem:[%s95 + $0x20] sm:$0xff]
    %v101 = vld [vmem:[%s95 + $0x28] sm:$0xff]
    %v102 = vld [vmem:[%s95 + $0x30] sm:$0xff]
    %v103 = vld [vmem:[%s95 + $0x38] sm:$0xff]
    %v104 = vld [vmem:[%s95 + $0x40] sm:$0xff]
    %v105 = vld [vmem:[%s95 + $0x48] sm:$0xff]
    %v106 = vld [vmem:[%s95 + $0x50] sm:$0xff]
    %v107 = vld [vmem:[%s95 + $0x58] sm:$0xff]
    %v108 = vld [vmem:[%s95 + $0x60] sm:$0xff]
    %v109 = vld [vmem:[%s95 + $0x68] sm:$0xff]
    %v110 = vld [vmem:[%s95 + $0x70] sm:$0xff]
    %v111 = vld [vmem:[%s95 + $0x78] sm:$0xff]
    %v112 = vld [vmem:[%s95 + $0x80] sm:$0xff]
    %v113 = vld [vmem:[%s95 + $0x88] sm:$0xff]
    %v114 = vld [vmem:[%s95 + $0x90] sm:$0xff]
    %v115 = vld [vmem:[%s95 + $0x98] sm:$0xff]
    %v116 = vld [vmem:[%s95 + $0xa0] sm:$0xff]
    %v117 = vld [vmem:[%s95 + $0xa8] sm:$0xff]
    %v118 = vld [vmem:[%s95 + $0xb0] sm:$0xff]
    %v119 = vld [vmem:[%s95 + $0xb8] sm:$0xff]
    %v120 = vld [vmem:[%s95 + $0xc0] sm:$0xff]
    %v121 = vld [vmem:[%s95 + $0xc8] sm:$0xff]
    %v122 = vld [vmem:[%s95 + $0xd0] sm:$0xff]
    %v123 = vld [vmem:[%s95 + $0xd8] sm:$0xff]
    %v124 = vld [vmem:[%s95 + $0xe0] sm:$0xff]
    %v125 = vld [vmem:[%s95 + $0xe8] sm:$0xff]
    %v126 = vld [vmem:[%s95 + $0xf0] sm:$0xff]
    %v127 = vld [vmem:[%s95 + $0xf8] sm:$0xff]
    %s128 = scalar_lea.vmem [#allocation7], 2
    %v129 = vld [vmem:[%s128] sm:$0x3]
    %v131 = vperm.slane %v129, 0
    %v132 = vperm.slane %v129, 1
    %135 = vmatpush.msra.mxu0 %v126
    %136 = vmatpush.msra.mxu0 %v124
    %137 = vmatpush.msra.mxu0 %v122
    %138 = vmatpush.msra.mxu0 %v120
    %139 = vmatpush.msra.mxu0 %v118
    %140 = vmatpush.msra.mxu0 %v116
    %141 = vmatpush.msra.mxu0 %v114
    %142 = vmatpush.msra.mxu0 %v112
    %143 = vmatpush.msra.mxu0 %v110
    %144 = vmatpush.msra.mxu0 %v108
    %145 = vmatpush.msra.mxu0 %v106
    %146 = vmatpush.msra.mxu0 %v104
    %147 = vmatpush.msra.mxu0 %v102
    %148 = vmatpush.msra.mxu0 %v100
    %149 = vmatpush.msra.mxu0 %v98
    %150 = vmatpush.msra.mxu0 %v96
    %151 = vmatmul.f32.gmra.mxu0 %v94
    %v152 = vpop.f32.mrf.mxu0
    %v153 = vadd.f32 %v131, %v152
    %154 = vdwg.mxu0
    %155 = vmatpush.msra.mxu0 %v127
    %156 = vmatpush.msra.mxu0 %v125
    %157 = vmatpush.msra.mxu0 %v123
    %158 = vmatpush.msra.mxu0 %v121
    %159 = vmatpush.msra.mxu0 %v119
    %160 = vmatpush.msra.mxu0 %v117
    %161 = vmatpush.msra.mxu0 %v115
    %162 = vmatpush.msra.mxu0 %v113
    %163 = vmatpush.msra.mxu0 %v111
    %164 = vmatpush.msra.mxu0 %v109
    %165 = vmatpush.msra.mxu0 %v107
    %166 = vmatpush.msra.mxu0 %v105
    %167 = vmatpush.msra.mxu0 %v103
    %168 = vmatpush.msra.mxu0 %v101
    %169 = vmatpush.msra.mxu0 %v99
    %170 = vmatpush.msra.mxu0 %v97
    %171 = vmatmul.f32.gmra.mxu0 %v94
    %v172 = vpop.f32.mrf.mxu0
    %v173 = vadd.f32 %v132, %v172
    %174 = vdwg.mxu0
    %v177 = vrot.slane %v173, 6
    %vm178 = vcmask 1041408
    %v179 = vsel %vm178, %v153, %v177
    %181 = vst [vmem:[#allocation8] sm:$0xf] %v179
    // Predicated region
    $region26: #{tpu_custom_call.1} parent=1 // pred_check
      _
    $region27: #{tpu_custom_call.1} parent=1 // pred_check_branch
      %183 = sbr.rel (0) target = $region29
    $region28: #{tpu_custom_call.1} parent=1 // pred_region
      %185 = vsyncadd [#allocation4], 0
      %s187 = sshll.u32 [#allocation8], 4
      %s188 = int_to_ptr.vmem [resolvable:$true] %s187
      %s189 = sshll.u32 %s3, 4
      %s190 = int_to_ptr.hbm [resolvable:$true] %s189
      %192 = dma.vmem_to_hbm [thread:$0]  %s188, 64, %s190, [#allocation4]
    $region29: #{tpu_custom_call.1} parent=1 // pred_fallthru
      _
    // Predicated region
    $region30: #{tpu_custom_call.1} parent=1 // pred_check
      _
    $region31: #{tpu_custom_call.1} parent=1 // pred_check_branch
      %194 = sbr.rel (0) target = $region33
    $region32: #{tpu_custom_call.1} parent=1 // pred_region
      %196 = dma.done [#allocation4], 64
    $region33: #{tpu_custom_call.1} parent=1 // pred_fallthru
      _
    %197 = vsyncpa [#allocation3], 1
    %198 = vsyncpa [#allocation6], 1
    %199 = vsyncpa [#allocation4], 1

</llo_original>
